<compile_context>
chip_gen: v7x
topology: tpu7x:2x2x1
jax: 0.10.0
libtpu: 0.0.40
codegen_flags: <defaults>
</compile_context>

<pallas_src>
import functools
import itertools

import jax
import jax.numpy as jnp
from jax import lax
from jax.experimental import pallas as pl
from jax.experimental.pallas import tpu as pltpu


def _num_tensorcores():
    """Best-effort TensorCore-per-chip detection (2 on v7x, else 1)."""
    try:
        kind = jax.devices()[0].device_kind.lower()
    except Exception:
        return 1
    return 2 if ("v7" in kind or "7x" in kind) else 1


def _vmem_capacity_bytes():
    try:
        return int(pltpu.get_tpu_info().vmem_capacity_bytes)
    except Exception:
        return 64 << 20          # conservative (v7x per-TC physical VMEM)


def _p2g_kernel(packed_ref, out_ref, *, grid_min, inv_dx, Dc, H, W, tile_n):
    c = pl.program_id(0)                      # D-chunk index (parallel axis)
    p = pl.program_id(1)                      # particle-tile index (reduction)

    @pl.when(p == 0)
    def _init():
        out_ref[...] = jnp.zeros_like(out_ref)

    # Per-axis node index (+1 shift) and quadratic B-spline weights, [1, Tn].
    gpos, wts = [], []
    for d in range(3):
        npd = (packed_ref[4 + d:5 + d, :] - grid_min[d]) * inv_dx
        gp = npd.astype(jnp.int32)            # trunc == torch .int(); npd >= 0
        lp = npd - gp.astype(jnp.float32)
        gpos.append(gp + 1)
        wts.append((0.5 * (1.0 - lp) ** 2,
                    0.75 - (0.5 - lp) ** 2,
                    0.5 * lp ** 2))

    # Separable banded scatter matrices: 3 compare/selects per axis instead of
    # 27 passes over a [G, Tn] matrix.  Out-of-range stencil nodes simply do
    # not match any row (the +2 grid padding keeps in-domain particles exact,
    # matching the reference).
    def banded(axis, size, offset):
        col = lax.broadcasted_iota(jnp.int32, (size, 1), 0) + offset   # [size,1]
        m = jnp.zeros((size, tile_n), jnp.float32)
        for k in range(3):
            m = m + jnp.where(col == gpos[axis] + (k - 1), wts[axis][k], 0.0)
        return m                                                        # [size,Tn]

    A = banded(0, Dc, c * Dc)                 # depth band for this chunk
    B = banded(1, H, 0)                       # height band
    Cw = banded(2, W, 0)                      # width band

    # LHS [Dc*H, Tn]: outer product of depth/height bands.
    if Dc == 1:
        AB = A * B                                              # [H, Tn]
    elif H % 8 == 0:
        # contiguous (layout-preserving) reshape when H is sublane-aligned
        AB = (A[:, None, :] * B[None, :, :]).reshape(Dc * H, tile_n)
    else:
        AB = jnp.concatenate([A[d:d + 1, :] * B for d in range(Dc)], axis=0)

    # RHS [4*W, Tn]: width band folded with value rows (0-2) and the valid
    # mask row (3) -> column layout ch*W + w.  No [G, Tn] matrix anywhere.
    vals = packed_ref[0:4, :]                                   # [4, Tn]
    CV = jnp.concatenate([vals[ch:ch + 1, :] * Cw for ch in range(4)], axis=0)

    # One MXU matmul per particle tile; RHS is small so a relayout (if Mosaic
    # inserts one for the minor-axis contraction) is cheap.
    contrib = lax.dot_general(
        AB, CV, dimension_numbers=(((1,), (1,)), ((), ())),
        preferred_element_type=jnp.float32)                     # [Dc*H, 4*W]
    out_ref[...] = out_ref[...] + contrib


def mpm_p2g(inp, pos, *, n_grid, grid_min, dx, tile_n=None, d_chunks=None):
    """Pallas TPU implementation of MpmP2G.forward(input, pos)."""
    N = pos.shape[0]
    assert pos.shape == (N, 3) and inp.shape == (N, 3)
    D, H, W = (int(n) + 2 for n in n_grid)

    # Generation-aware VMEM budget (v5e/v6e: 128 MiB, v7x: 64 MiB per TC).
    vmem_cap = _vmem_capacity_bytes()
    vmem_limit = int(min(vmem_cap * 3 // 4, 112 << 20))
    budget = min(vmem_limit // 3, 16 << 20)   # working-set target with headroom

    def ws_bytes(dc, tn):
        # AB + 3D intermediate + CV + A/B/C bands + out block (+contrib)
        # + double-buffered (8, tn) input blocks, all f32.
        return 4 * (2 * dc * H * tn + 4 * W * tn + (dc + H + W) * tn
                    + 2 * dc * H * 4 * W + 2 * 8 * tn)

    # Particle-tile size: large tiles amortize per-tile band construction and
    # grid-step overhead; operands are tiny now, so up to 2048 is allowed.
    if tile_n is None:
        tile_n = min(2048, 128 * pl.cdiv(max(N, 1), 128))
    tile_n = max(128, (int(tile_n) // 128) * 128)

    # D-chunk axis: 1 chunk on single-TC chips (v5e/v6e); >=2 on v7x for
    # megacore; more chunks only if needed to fit the VMEM budget (large G).
    if d_chunks is None:
        d_chunks = 1
        while ws_bytes(pl.cdiv(D, d_chunks), tile_n) > budget:
            if tile_n > 256:
                tile_n -= 128
            elif pl.cdiv(D, d_chunks) > 1:
                d_chunks += 1
            elif tile_n > 128:
                tile_n -= 128
            else:
                break
        if d_chunks == 1 and _num_tensorcores() >= 2 and D >= 2:
            d_chunks = 2
    Dc = pl.cdiv(D, d_chunks)
    if d_chunks > 1:
        # (8,128) rule: when the output is tiled, its sublane block dim
        # (Dc*H) must be a multiple of 8.
        while (Dc * H) % 8 != 0:
            Dc += 1
        d_chunks = pl.cdiv(D, Dc)
    D_pad = Dc * d_chunks

    n_tiles = pl.cdiv(N, tile_n)
    N_pad = n_tiles * tile_n

    pos_t = jnp.asarray(pos, jnp.float32).T                     # [3, N]
    inp_t = jnp.asarray(inp, jnp.float32).T                     # [3, N]
    packed = jnp.concatenate(
        [inp_t, jnp.ones((1, N), jnp.float32),
         pos_t, jnp.zeros((1, N), jnp.float32)], axis=0)        # [8, N]
    if N_pad != N:
        # Padded particles: zero value & zero valid mask -> zero contribution;
        # give them an in-domain position so the weight math stays finite.
        pad = jnp.zeros((8, N_pad - N), jnp.float32)
        pad_pos = jnp.asarray(grid_min, jnp.float32).reshape(3, 1) + 0.5 * float(dx)
        pad = pad.at[4:7, :].set(pad_pos)
        packed = jnp.concatenate([packed, pad], axis=1)         # [8, N_pad]

    kernel = functools.partial(
        _p2g_kernel,
        grid_min=tuple(float(g) for g in grid_min),
        inv_dx=1.0 / float(dx), Dc=Dc, H=H, W=W, tile_n=tile_n)

    raw = pl.pallas_call(
        kernel,
        out_shape=jax.ShapeDtypeStruct((D_pad * H, 4 * W), jnp.float32),
        grid_spec=pltpu.PrefetchScalarGridSpec(
            num_scalar_prefetch=0,
            grid=(d_chunks, n_tiles),               # (D-chunk, particle-tile)
            in_specs=[pl.BlockSpec((8, tile_n), lambda c, p: (0, p))],
            out_specs=pl.BlockSpec((Dc * H, 4 * W), lambda c, p: (c, 0))),
        compiler_params=pltpu.CompilerParams(
            dimension_semantics=("parallel", "arbitrary"),
            vmem_limit_bytes=vmem_limit),
    )(packed)

    # Tiny XLA epilogue: drop D padding, split channels, weight==0 -> 1, divide.
    acc = raw[: D * H].reshape(D, H, 4, W)                      # [D, H, 4, W]
    gv = jnp.transpose(acc[:, :, :3, :], (0, 1, 3, 2))          # [D, H, W, 3]
    gw = acc[:, :, 3, :][..., None]                             # [D, H, W, 1]
    gw = jnp.where(gw == 0.0, 1.0, gw)
    return gv / gw


def mpm_p2g_ref(inp, pos, *, n_grid, grid_min, dx):
    """Pure-JAX reference mirroring the PyTorch module."""
    D, H, W = (int(n) + 2 for n in n_grid)
    G = D * H * W
    npos = (pos - jnp.asarray(grid_min, jnp.float32)) / jnp.float32(dx)
    gpos = npos.astype(jnp.int32)
    lpos = npos - gpos.astype(jnp.float32)
    gpos = gpos + 1
    w = [0.5 * (1.0 - lpos) ** 2, 0.75 - (0.5 - lpos) ** 2, 0.5 * lpos ** 2]
    gv = jnp.zeros((G, 3), jnp.float32)
    gw = jnp.zeros((G, 1), jnp.float32)
    for i, j, k in itertools.product(range(3), repeat=3):
        wt = w[i][:, 0:1] * w[j][:, 1:2] * w[k][:, 2:3]
        idx = ((gpos[:, 0] + i - 1) * (H * W)
               + (gpos[:, 1] + j - 1) * W
               + (gpos[:, 2] + k - 1))
        gv = gv.at[idx].add(inp * wt)
        gw = gw.at[idx].add(wt)
    gw = jnp.where(gw == 0.0, 1.0, gw)
    return (gv / gw).reshape(D, H, W, 3)


if __name__ == "__main__":
    # Module "parameters" (registered buffers) -- deterministic constants.
    n_grid = (6, 6, 6)          # grid is (n_grid + 2) = 8x8x8 nodes
    grid_min = (-1.0, -1.0, -1.0)
    dx = 0.25
    N = 256                     # number of particles

    key = jax.random.PRNGKey(0)
    kp, ki = jax.random.split(key)
    extent = jnp.asarray(n_grid, jnp.float32) * dx
    # positions strictly inside the grid domain so all 27 stencil nodes are valid
    pos = (jnp.asarray(grid_min, jnp.float32)
           + jax.random.uniform(kp, (N, 3), jnp.float32) * extent * 0.999)
    inp = jax.random.normal(ki, (N, 3), jnp.float32)

    out = mpm_p2g(inp, pos, n_grid=n_grid, grid_min=grid_min, dx=dx)
    out = jax.block_until_ready(out)

    ref = mpm_p2g_ref(inp, pos, n_grid=n_grid, grid_min=grid_min, dx=dx)
    assert out.shape == ref.shape == (8, 8, 8, 3), out.shape
    err = float(jnp.max(jnp.abs(out - ref)))
    assert jnp.allclose(out, ref, rtol=1e-4, atol=1e-4), f"max abs err {err}"
    print("KERNEL_OK")
</pallas_src>

<mosaic_0001>
module attributes {stable_mosaic.version = 11 : i64} {
  func.func @_p2g_kernel(%arg0: i32, %arg1: i32, %arg2: memref<8x256xf32, #tpu.memory_space<vmem>>, %arg3: memref<64x32xf32, #tpu.memory_space<vmem>>) attributes {dimension_semantics = [#tpu.dimension_semantics<parallel>, #tpu.dimension_semantics<arbitrary>], iteration_bounds = array<i64: 1, 1>, scalar_prefetch = 0 : i64, scratch_operands = 0 : i64, tpu.core_type = #tpu.core_type<tc>, window_params = [{transform_indices = @transform_0, window_bounds = array<i64: 8, 256>}, {transform_indices = @transform_1, window_bounds = array<i64: 64, 32>}]} {
    %c0_i32 = arith.constant 0 : i32
    %0 = arith.cmpi eq, %arg1, %c0_i32 : i32
    %1 = arith.extui %0 : i1 to i32
    %c0_i32_0 = arith.constant 0 : i32
    %2 = arith.cmpi ne, %1, %c0_i32_0 : i32
    scf.if %2 {
      %cst_54 = arith.constant 0.000000e+00 : f32
      %199 = vector.broadcast %cst_54 : f32 to vector<64x32xf32>
      %c0_55 = arith.constant 0 : index
      %c0_56 = arith.constant 0 : index
      %200 = vector.load %arg3[%c0_55, %c0_56] : memref<64x32xf32, #tpu.memory_space<vmem>>, vector<64x32xf32>
      tpu.vector_store %arg3[%c0_55, %c0_56], %199 {strides = array<i32>} : memref<64x32xf32, #tpu.memory_space<vmem>>, vector<64x32xf32>,
    } else {
    }
    %c4 = arith.constant 4 : index
    %c0 = arith.constant 0 : index
    %3 = vector.load %arg2[%c4, %c0] : memref<8x256xf32, #tpu.memory_space<vmem>>, vector<1x256xf32>
    %cst = arith.constant -1.000000e+00 : f32
    %4 = vector.broadcast %cst : f32 to vector<1x256xf32>
    %5 = arith.subf %3, %4 : vector<1x256xf32>
    %cst_1 = arith.constant 4.000000e+00 : f32
    %6 = vector.broadcast %cst_1 : f32 to vector<1x256xf32>
    %7 = arith.mulf %5, %6 : vector<1x256xf32>
    %8 = arith.fptosi %7 : vector<1x256xf32> to vector<1x256xi32>
    %9 = arith.sitofp %8 : vector<1x256xi32> to vector<1x256xf32>
    %10 = arith.subf %7, %9 : vector<1x256xf32>
    %c1_i32 = arith.constant 1 : i32
    %11 = vector.broadcast %c1_i32 : i32 to vector<1x256xi32>
    %12 = arith.addi %8, %11 : vector<1x256xi32>
    %cst_2 = arith.constant 1.000000e+00 : f32
    %13 = vector.broadcast %cst_2 : f32 to vector<1x256xf32>
    %14 = arith.subf %13, %10 : vector<1x256xf32>
    %15 = arith.mulf %14, %14 : vector<1x256xf32>
    %cst_3 = arith.constant 5.000000e-01 : f32
    %16 = vector.broadcast %cst_3 : f32 to vector<1x256xf32>
    %17 = arith.mulf %16, %15 : vector<1x256xf32>
    %cst_4 = arith.constant 5.000000e-01 : f32
    %18 = vector.broadcast %cst_4 : f32 to vector<1x256xf32>
    %19 = arith.subf %18, %10 : vector<1x256xf32>
    %20 = arith.mulf %19, %19 : vector<1x256xf32>
    %cst_5 = arith.constant 7.500000e-01 : f32
    %21 = vector.broadcast %cst_5 : f32 to vector<1x256xf32>
    %22 = arith.subf %21, %20 : vector<1x256xf32>
    %23 = arith.mulf %10, %10 : vector<1x256xf32>
    %cst_6 = arith.constant 5.000000e-01 : f32
    %24 = vector.broadcast %cst_6 : f32 to vector<1x256xf32>
    %25 = arith.mulf %24, %23 : vector<1x256xf32>
    %c5 = arith.constant 5 : index
    %c0_7 = arith.constant 0 : index
    %26 = vector.load %arg2[%c5, %c0_7] : memref<8x256xf32, #tpu.memory_space<vmem>>, vector<1x256xf32>
    %cst_8 = arith.constant -1.000000e+00 : f32
    %27 = vector.broadcast %cst_8 : f32 to vector<1x256xf32>
    %28 = arith.subf %26, %27 : vector<1x256xf32>
    %cst_9 = arith.constant 4.000000e+00 : f32
    %29 = vector.broadcast %cst_9 : f32 to vector<1x256xf32>
    %30 = arith.mulf %28, %29 : vector<1x256xf32>
    %31 = arith.fptosi %30 : vector<1x256xf32> to vector<1x256xi32>
    %32 = arith.sitofp %31 : vector<1x256xi32> to vector<1x256xf32>
    %33 = arith.subf %30, %32 : vector<1x256xf32>
    %c1_i32_10 = arith.constant 1 : i32
    %34 = vector.broadcast %c1_i32_10 : i32 to vector<1x256xi32>
    %35 = arith.addi %31, %34 : vector<1x256xi32>
    %cst_11 = arith.constant 1.000000e+00 : f32
    %36 = vector.broadcast %cst_11 : f32 to vector<1x256xf32>
    %37 = arith.subf %36, %33 : vector<1x256xf32>
    %38 = arith.mulf %37, %37 : vector<1x256xf32>
    %cst_12 = arith.constant 5.000000e-01 : f32
    %39 = vector.broadcast %cst_12 : f32 to vector<1x256xf32>
    %40 = arith.mulf %39, %38 : vector<1x256xf32>
    %cst_13 = arith.constant 5.000000e-01 : f32
    %41 = vector.broadcast %cst_13 : f32 to vector<1x256xf32>
    %42 = arith.subf %41, %33 : vector<1x256xf32>
    %43 = arith.mulf %42, %42 : vector<1x256xf32>
    %cst_14 = arith.constant 7.500000e-01 : f32
    %44 = vector.broadcast %cst_14 : f32 to vector<1x256xf32>
    %45 = arith.subf %44, %43 : vector<1x256xf32>
    %46 = arith.mulf %33, %33 : vector<1x256xf32>
    %cst_15 = arith.constant 5.000000e-01 : f32
    %47 = vector.broadcast %cst_15 : f32 to vector<1x256xf32>
    %48 = arith.mulf %47, %46 : vector<1x256xf32>
    %c6 = arith.constant 6 : index
    %c0_16 = arith.constant 0 : index
    %49 = vector.load %arg2[%c6, %c0_16] : memref<8x256xf32, #tpu.memory_space<vmem>>, vector<1x256xf32>
    %cst_17 = arith.constant -1.000000e+00 : f32
    %50 = vector.broadcast %cst_17 : f32 to vector<1x256xf32>
    %51 = arith.subf %49, %50 : vector<1x256xf32>
    %cst_18 = arith.constant 4.000000e+00 : f32
    %52 = vector.broadcast %cst_18 : f32 to vector<1x256xf32>
    %53 = arith.mulf %51, %52 : vector<1x256xf32>
    %54 = arith.fptosi %53 : vector<1x256xf32> to vector<1x256xi32>
    %55 = arith.sitofp %54 : vector<1x256xi32> to vector<1x256xf32>
    %56 = arith.subf %53, %55 : vector<1x256xf32>
    %c1_i32_19 = arith.constant 1 : i32
    %57 = vector.broadcast %c1_i32_19 : i32 to vector<1x256xi32>
    %58 = arith.addi %54, %57 : vector<1x256xi32>
    %cst_20 = arith.constant 1.000000e+00 : f32
    %59 = vector.broadcast %cst_20 : f32 to vector<1x256xf32>
    %60 = arith.subf %59, %56 : vector<1x256xf32>
    %61 = arith.mulf %60, %60 : vector<1x256xf32>
    %cst_21 = arith.constant 5.000000e-01 : f32
    %62 = vector.broadcast %cst_21 : f32 to vector<1x256xf32>
    %63 = arith.mulf %62, %61 : vector<1x256xf32>
    %cst_22 = arith.constant 5.000000e-01 : f32
    %64 = vector.broadcast %cst_22 : f32 to vector<1x256xf32>
    %65 = arith.subf %64, %56 : vector<1x256xf32>
    %66 = arith.mulf %65, %65 : vector<1x256xf32>
    %cst_23 = arith.constant 7.500000e-01 : f32
    %67 = vector.broadcast %cst_23 : f32 to vector<1x256xf32>
    %68 = arith.subf %67, %66 : vector<1x256xf32>
    %69 = arith.mulf %56, %56 : vector<1x256xf32>
    %cst_24 = arith.constant 5.000000e-01 : f32
    %70 = vector.broadcast %cst_24 : f32 to vector<1x256xf32>
    %71 = arith.mulf %70, %69 : vector<1x256xf32>
    %c8_i32 = arith.constant 8 : i32
    %72 = arith.muli %arg0, %c8_i32 : i32
    %73 = tpu.iota {dimensions = array<i32: 0>} : vector<8x1xi32>
    %74 = vector.broadcast %72 : i32 to vector<8x1xi32>
    %75 = arith.addi %73, %74 : vector<8x1xi32>
    %cst_25 = arith.constant 0.000000e+00 : f32
    %76 = vector.broadcast %cst_25 : f32 to vector<8x256xf32>
    %c-1_i32 = arith.constant -1 : i32
    %77 = vector.broadcast %c-1_i32 : i32 to vector<1x256xi32>
    %78 = arith.addi %12, %77 : vector<1x256xi32>
    %79 = vector.broadcast %75 : vector<8x1xi32> to vector<8x256xi32>
    %80 = vector.broadcast %78 : vector<1x256xi32> to vector<8x256xi32>
    %81 = arith.cmpi eq, %79, %80 : vector<8x256xi32>
    %cst_26 = arith.constant 0.000000e+00 : f32
    %82 = vector.shape_cast %17 : vector<1x256xf32> to vector<1x256xf32>
    %83 = vector.broadcast %82 : vector<1x256xf32> to vector<8x256xf32>
    %84 = vector.broadcast %cst_26 : f32 to vector<8x256xf32>
    %85 = arith.select %81, %83, %84 : vector<8x256xi1>, vector<8x256xf32>
    %86 = arith.addf %76, %85 : vector<8x256xf32>
    %c0_i32_27 = arith.constant 0 : i32
    %87 = vector.broadcast %c0_i32_27 : i32 to vector<1x256xi32>
    %88 = arith.addi %12, %87 : vector<1x256xi32>
    %89 = vector.broadcast %75 : vector<8x1xi32> to vector<8x256xi32>
    %90 = vector.broadcast %88 : vector<1x256xi32> to vector<8x256xi32>
    %91 = arith.cmpi eq, %89, %90 : vector<8x256xi32>
    %cst_28 = arith.constant 0.000000e+00 : f32
    %92 = vector.shape_cast %22 : vector<1x256xf32> to vector<1x256xf32>
    %93 = vector.broadcast %92 : vector<1x256xf32> to vector<8x256xf32>
    %94 = vector.broadcast %cst_28 : f32 to vector<8x256xf32>
    %95 = arith.select %91, %93, %94 : vector<8x256xi1>, vector<8x256xf32>
    %96 = arith.addf %86, %95 : vector<8x256xf32>
    %c1_i32_29 = arith.constant 1 : i32
    %97 = vector.broadcast %c1_i32_29 : i32 to vector<1x256xi32>
    %98 = arith.addi %12, %97 : vector<1x256xi32>
    %99 = vector.broadcast %75 : vector<8x1xi32> to vector<8x256xi32>
    %100 = vector.broadcast %98 : vector<1x256xi32> to vector<8x256xi32>
    %101 = arith.cmpi eq, %99, %100 : vector<8x256xi32>
    %cst_30 = arith.constant 0.000000e+00 : f32
    %102 = vector.shape_cast %25 : vector<1x256xf32> to vector<1x256xf32>
    %103 = vector.broadcast %102 : vector<1x256xf32> to vector<8x256xf32>
    %104 = vector.broadcast %cst_30 : f32 to vector<8x256xf32>
    %105 = arith.select %101, %103, %104 : vector<8x256xi1>, vector<8x256xf32>
    %106 = arith.addf %96, %105 : vector<8x256xf32>
    %107 = tpu.iota {dimensions = array<i32: 0>} : vector<8x1xi32>
    %c0_i32_31 = arith.constant 0 : i32
    %108 = vector.broadcast %c0_i32_31 : i32 to vector<8x1xi32>
    %109 = arith.addi %107, %108 : vector<8x1xi32>
    %cst_32 = arith.constant 0.000000e+00 : f32
    %110 = vector.broadcast %cst_32 : f32 to vector<8x256xf32>
    %c-1_i32_33 = arith.constant -1 : i32
    %111 = vector.broadcast %c-1_i32_33 : i32 to vector<1x256xi32>
    %112 = arith.addi %35, %111 : vector<1x256xi32>
    %113 = vector.broadcast %109 : vector<8x1xi32> to vector<8x256xi32>
    %114 = vector.broadcast %112 : vector<1x256xi32> to vector<8x256xi32>
    %115 = arith.cmpi eq, %113, %114 : vector<8x256xi32>
    %cst_34 = arith.constant 0.000000e+00 : f32
    %116 = vector.shape_cast %40 : vector<1x256xf32> to vector<1x256xf32>
    %117 = vector.broadcast %116 : vector<1x256xf32> to vector<8x256xf32>
    %118 = vector.broadcast %cst_34 : f32 to vector<8x256xf32>
    %119 = arith.select %115, %117, %118 : vector<8x256xi1>, vector<8x256xf32>
    %120 = arith.addf %110, %119 : vector<8x256xf32>
    %c0_i32_35 = arith.constant 0 : i32
    %121 = vector.broadcast %c0_i32_35 : i32 to vector<1x256xi32>
    %122 = arith.addi %35, %121 : vector<1x256xi32>
    %123 = vector.broadcast %109 : vector<8x1xi32> to vector<8x256xi32>
    %124 = vector.broadcast %122 : vector<1x256xi32> to vector<8x256xi32>
    %125 = arith.cmpi eq, %123, %124 : vector<8x256xi32>
    %cst_36 = arith.constant 0.000000e+00 : f32
    %126 = vector.shape_cast %45 : vector<1x256xf32> to vector<1x256xf32>
    %127 = vector.broadcast %126 : vector<1x256xf32> to vector<8x256xf32>
    %128 = vector.broadcast %cst_36 : f32 to vector<8x256xf32>
    %129 = arith.select %125, %127, %128 : vector<8x256xi1>, vector<8x256xf32>
    %130 = arith.addf %120, %129 : vector<8x256xf32>
    %c1_i32_37 = arith.constant 1 : i32
    %131 = vector.broadcast %c1_i32_37 : i32 to vector<1x256xi32>
    %132 = arith.addi %35, %131 : vector<1x256xi32>
    %133 = vector.broadcast %109 : vector<8x1xi32> to vector<8x256xi32>
    %134 = vector.broadcast %132 : vector<1x256xi32> to vector<8x256xi32>
    %135 = arith.cmpi eq, %133, %134 : vector<8x256xi32>
    %cst_38 = arith.constant 0.000000e+00 : f32
    %136 = vector.shape_cast %48 : vector<1x256xf32> to vector<1x256xf32>
    %137 = vector.broadcast %136 : vector<1x256xf32> to vector<8x256xf32>
    %138 = vector.broadcast %cst_38 : f32 to vector<8x256xf32>
    %139 = arith.select %135, %137, %138 : vector<8x256xi1>, vector<8x256xf32>
    %140 = arith.addf %130, %139 : vector<8x256xf32>
    %141 = tpu.iota {dimensions = array<i32: 0>} : vector<8x1xi32>
    %c0_i32_39 = arith.constant 0 : i32
    %142 = vector.broadcast %c0_i32_39 : i32 to vector<8x1xi32>
    %143 = arith.addi %141, %142 : vector<8x1xi32>
    %cst_40 = arith.constant 0.000000e+00 : f32
    %144 = vector.broadcast %cst_40 : f32 to vector<8x256xf32>
    %c-1_i32_41 = arith.constant -1 : i32
    %145 = vector.broadcast %c-1_i32_41 : i32 to vector<1x256xi32>
    %146 = arith.addi %58, %145 : vector<1x256xi32>
    %147 = vector.broadcast %143 : vector<8x1xi32> to vector<8x256xi32>
    %148 = vector.broadcast %146 : vector<1x256xi32> to vector<8x256xi32>
    %149 = arith.cmpi eq, %147, %148 : vector<8x256xi32>
    %cst_42 = arith.constant 0.000000e+00 : f32
    %150 = vector.shape_cast %63 : vector<1x256xf32> to vector<1x256xf32>
    %151 = vector.broadcast %150 : vector<1x256xf32> to vector<8x256xf32>
    %152 = vector.broadcast %cst_42 : f32 to vector<8x256xf32>
    %153 = arith.select %149, %151, %152 : vector<8x256xi1>, vector<8x256xf32>
    %154 = arith.addf %144, %153 : vector<8x256xf32>
    %c0_i32_43 = arith.constant 0 : i32
    %155 = vector.broadcast %c0_i32_43 : i32 to vector<1x256xi32>
    %156 = arith.addi %58, %155 : vector<1x256xi32>
    %157 = vector.broadcast %143 : vector<8x1xi32> to vector<8x256xi32>
    %158 = vector.broadcast %156 : vector<1x256xi32> to vector<8x256xi32>
    %159 = arith.cmpi eq, %157, %158 : vector<8x256xi32>
    %cst_44 = arith.constant 0.000000e+00 : f32
    %160 = vector.shape_cast %68 : vector<1x256xf32> to vector<1x256xf32>
    %161 = vector.broadcast %160 : vector<1x256xf32> to vector<8x256xf32>
    %162 = vector.broadcast %cst_44 : f32 to vector<8x256xf32>
    %163 = arith.select %159, %161, %162 : vector<8x256xi1>, vector<8x256xf32>
    %164 = arith.addf %154, %163 : vector<8x256xf32>
    %c1_i32_45 = arith.constant 1 : i32
    %165 = vector.broadcast %c1_i32_45 : i32 to vector<1x256xi32>
    %166 = arith.addi %58, %165 : vector<1x256xi32>
    %167 = vector.broadcast %143 : vector<8x1xi32> to vector<8x256xi32>
    %168 = vector.broadcast %166 : vector<1x256xi32> to vector<8x256xi32>
    %169 = arith.cmpi eq, %167, %168 : vector<8x256xi32>
    %cst_46 = arith.constant 0.000000e+00 : f32
    %170 = vector.shape_cast %71 : vector<1x256xf32> to vector<1x256xf32>
    %171 = vector.broadcast %170 : vector<1x256xf32> to vector<8x256xf32>
    %172 = vector.broadcast %cst_46 : f32 to vector<8x256xf32>
    %173 = arith.select %169, %171, %172 : vector<8x256xi1>, vector<8x256xf32>
    %174 = arith.addf %164, %173 : vector<8x256xf32>
    %175 = vector.shape_cast %106 : vector<8x256xf32> to vector<8x1x256xf32>
    %176 = vector.shape_cast %140 : vector<8x256xf32> to vector<1x8x256xf32>
    %177 = vector.broadcast %175 : vector<8x1x256xf32> to vector<8x8x256xf32>
    %178 = vector.broadcast %176 : vector<1x8x256xf32> to vector<8x8x256xf32>
    %179 = arith.mulf %177, %178 : vector<8x8x256xf32>
    %180 = vector.shape_cast %179 : vector<8x8x256xf32> to vector<64x256xf32>
    %c0_47 = arith.constant 0 : index
    %c0_48 = arith.constant 0 : index
    %181 = vector.load %arg2[%c0_47, %c0_48] : memref<8x256xf32, #tpu.memory_space<vmem>>, vector<4x256xf32>
    %182 = vector.extract_strided_slice %181 {offsets = [0, 0], sizes = [1, 256], strides = [1, 1]} : vector<4x256xf32> to vector<1x256xf32>
    %183 = vector.broadcast %182 : vector<1x256xf32> to vector<8x256xf32>
    %184 = arith.mulf %183, %174 : vector<8x256xf32>
    %185 = vector.extract_strided_slice %181 {offsets = [1, 0], sizes = [1, 256], strides = [1, 1]} : vector<4x256xf32> to vector<1x256xf32>
    %186 = vector.broadcast %185 : vector<1x256xf32> to vector<8x256xf32>
    %187 = arith.mulf %186, %174 : vector<8x256xf32>
    %188 = vector.extract_strided_slice %181 {offsets = [2, 0], sizes = [1, 256], strides = [1, 1]} : vector<4x256xf32> to vector<1x256xf32>
    %189 = vector.broadcast %188 : vector<1x256xf32> to vector<8x256xf32>
    %190 = arith.mulf %189, %174 : vector<8x256xf32>
    %191 = vector.extract_strided_slice %181 {offsets = [3, 0], sizes = [1, 256], strides = [1, 1]} : vector<4x256xf32> to vector<1x256xf32>
    %192 = vector.broadcast %191 : vector<1x256xf32> to vector<8x256xf32>
    %193 = arith.mulf %192, %174 : vector<8x256xf32>
    %194 = tpu.concatenate %184, %187, %190, %193 in 0 : vector<8x256xf32>, vector<8x256xf32>, vector<8x256xf32>, vector<8x256xf32> -> vector<32x256xf32>
    %cst_49 = arith.constant dense<0.000000e+00> : vector<64x32xf32>
    %195 = tpu.matmul %180, %194, %cst_49 {dimension_numbers = #tpu.dot_dimension_numbers<[1], [1], [0], [0], [0, 0, 1, 0], [], []>} : vector<64x256xf32>, vector<32x256xf32>, vector<64x32xf32> -> vector<64x32xf32>
    %c0_50 = arith.constant 0 : index
    %c0_51 = arith.constant 0 : index
    %196 = vector.load %arg3[%c0_50, %c0_51] : memref<64x32xf32, #tpu.memory_space<vmem>>, vector<64x32xf32>
    %197 = arith.addf %196, %195 : vector<64x32xf32>
    %c0_52 = arith.constant 0 : index
    %c0_53 = arith.constant 0 : index
    %198 = vector.load %arg3[%c0_52, %c0_53] : memref<64x32xf32, #tpu.memory_space<vmem>>, vector<64x32xf32>
    tpu.vector_store %arg3[%c0_52, %c0_53], %197 {strides = array<i32>} : memref<64x32xf32, #tpu.memory_space<vmem>>, vector<64x32xf32>,
    return
  }
  func.func @transform_0(%arg0: i32, %arg1: i32) -> (i32, i32) {
    %c0_i32 = arith.constant 0 : i32
    %c0_i32_0 = arith.constant 0 : i32
    return %c0_i32, %arg1 : i32, i32
  }
  func.func @transform_1(%arg0: i32, %arg1: i32) -> (i32, i32) {
    %c0_i32 = arith.constant 0 : i32
    %c0_i32_0 = arith.constant 0 : i32
    return %arg0, %c0_i32 : i32, i32
  }
}

</mosaic_0001>

<llo_original>
// kernel: tpu_custom_call.1
$region0: #{tpu_custom_call.1}
  #allocation0 [shape = 'u32[]', space=smem, size = 0x4, offset = 0x4, fixed_abs, tag = 'smem constant byte address 0x4 - core index']
  #allocation1 [shape = 'u32[144,128]{1,0:T(1,128)}', space=vmem, size = 0x12000, scoped, tag = 'internal scratch']
  %s0 = inlined_call_operand.hbm [shape: f32[8,256], index: 0, kind: input, shape index: {}]
  %s1 = inlined_call_operand.vmem [shape: f32[64,32], index: 1, kind: output, shape index: {}]
  %s2 = sld [smem:[#allocation0]]
  $region22: #{tpu_custom_call.1} parent=0
    _
  %s4 = ssub.s32 1, %s2
  %s5 = scalar_select 0, %s4, %s2
  $region1: #{tpu_custom_call.1} parent=0
    #allocation2 [shape = 'u8[8192]{0}', space=vmem, size = 0x2000, scoped, tag = 'input window, operand 0, single buffered']
    #allocation3 [shape = 's32[1]{0}', space=sflag, size = 0x4, scoped, tag = 'scoped memory for tpu_custom_call.1']
    %6 = vsyncpa [#allocation3], 0
    // Predicated region
    $region2: #{tpu_custom_call.1} parent=1 // pred_check
      _
    $region3: #{tpu_custom_call.1} parent=1 // pred_check_branch
      %8 = sbr.rel (0) target = $region5
    $region4: #{tpu_custom_call.1} parent=1 // pred_region
      %s10 = ssub.s32 256, 256
      %11 = vsyncadd [#allocation3], %s10
      %s13 = sshll.u32 [#allocation2], 4
      %s14 = int_to_ptr.vmem [resolvable:$true] %s13
      %16 = dma.hbm_to_vmem [thread:$0]  %s0, 256, %s14, [#allocation3]
    $region5: #{tpu_custom_call.1} parent=1 // pred_fallthru
      _
    // Predicated region
    $region6: #{tpu_custom_call.1} parent=1 // pred_check
      _
    $region7: #{tpu_custom_call.1} parent=1 // pred_check_branch
      %18 = sbr.rel (0) target = $region9
    $region8: #{tpu_custom_call.1} parent=1 // pred_region
      %19 = dma.done [#allocation3], 256
    $region9: #{tpu_custom_call.1} parent=1 // pred_fallthru
      _
    %p20 = scmp.eq.s32.totalorder 0, 0
    // Predicated region
    $region10: #{tpu_custom_call.1} parent=1 // pred_check
      %p21 = pneg %p20
    $region11: #{tpu_custom_call.1} parent=1 // pred_check_branch
      %23 = sbr.rel (%p21) target = $region13
    $region12: #{tpu_custom_call.1} parent=1 // pred_region
      %vm24 = vcmask 261120
      %25 = vst.msk [vmem:[%s1] sm:$0xff] %vm24, 0.0
      %26 = vst.msk [vmem:[%s1 + $0x8] sm:$0xff] %vm24, 0.0
      %27 = vst.msk [vmem:[%s1 + $0x10] sm:$0xff] %vm24, 0.0
      %28 = vst.msk [vmem:[%s1 + $0x18] sm:$0xff] %vm24, 0.0
      %29 = vst.msk [vmem:[%s1 + $0x20] sm:$0xff] %vm24, 0.0
      %30 = vst.msk [vmem:[%s1 + $0x28] sm:$0xff] %vm24, 0.0
      %31 = vst.msk [vmem:[%s1 + $0x30] sm:$0xff] %vm24, 0.0
      %32 = vst.msk [vmem:[%s1 + $0x38] sm:$0xff] %vm24, 0.0
    $region13: #{tpu_custom_call.1} parent=1 // pred_fallthru
      _
    %s33 = scalar_lea.vmem [#allocation2], 4
    %v34 = vld [vmem:[%s33] ss:$8 sm:$0x3]
    %v35 = vsub.f32 %v34, -1.0
    %v36 = vmul.f32 %v35, 4.0
    %v37 = vcvt.f32.s32.to.zero.pseudo %v36
    %v38 = vcvt.s32.f32 %v37
    %v39 = vsub.f32 %v36, %v38
    %v40 = vadd.s32 %v37, 1
    %v41 = vsub.f32 1.0, %v39
    %v42 = vmul.f32 %v41, %v41
    %v43 = vmul.f32 %v42, 0.5
    %v44 = vsub.f32 0.5, %v39
    %v45 = vmul.f32 %v44, %v44
    %v46 = vsub.f32 0.75, %v45
    %v47 = vmul.f32 %v39, %v39
    %v48 = vmul.f32 %v47, 0.5
    %s49 = scalar_lea.vmem [#allocation2], 5
    %v50 = vld [vmem:[%s49] ss:$8 sm:$0x3]
    %v51 = vsub.f32 %v50, -1.0
    %v52 = vmul.f32 %v51, 4.0
    %v53 = vcvt.f32.s32.to.zero.pseudo %v52
    %v54 = vcvt.s32.f32 %v53
    %v55 = vsub.f32 %v52, %v54
    %v56 = vadd.s32 %v53, 1
    %v57 = vsub.f32 1.0, %v55
    %v58 = vmul.f32 %v57, %v57
    %v59 = vmul.f32 %v58, 0.5
    %v60 = vsub.f32 0.5, %v55
    %v61 = vmul.f32 %v60, %v60
    %v62 = vsub.f32 0.75, %v61
    %v63 = vmul.f32 %v55, %v55
    %v64 = vmul.f32 %v63, 0.5
    %s65 = scalar_lea.vmem [#allocation2], 6
    %v66 = vld [vmem:[%s65] ss:$8 sm:$0x3]
    %v67 = vsub.f32 %v66, -1.0
    %v68 = vmul.f32 %v67, 4.0
    %v69 = vcvt.f32.s32.to.zero.pseudo %v68
    %v70 = vcvt.s32.f32 %v69
    %v71 = vsub.f32 %v68, %v70
    %v72 = vadd.s32 %v69, 1
    %v73 = vsub.f32 1.0, %v71
    %v74 = vmul.f32 %v73, %v73
    %v75 = vmul.f32 %v74, 0.5
    %v76 = vsub.f32 0.5, %v71
    %v77 = vmul.f32 %v76, %v76
    %v78 = vsub.f32 0.75, %v77
    %v79 = vmul.f32 %v71, %v71
    %v80 = vmul.f32 %v79, 0.5
    %s81 = smul.u32 0, 8
    %v82 = vlaneseq
    %v83 = vshrl.u32 %v82, 7
    %v84 = vstv %s81
    %v85 = vadd.s32 %v83, %v84
    %v86 = vadd.s32 %v40, 4294967295
    %v87 = vlaneseq
    %v88 = vshrl.u32 %v87, 7
    %v89 = vsub.s32 0, %v88
    %v90 = vrot.slane %v86, %v89
    %v91 = vlaneseq
    %v92 = vshrl.u32 %v91, 7
    %v93 = vsub.s32 1, %v92
    %v94 = vrot.slane %v86, %v93
    %vm95 = vcmp.eq.s32.totalorder %v85, %v90
    %vm96 = vcmp.eq.s32.totalorder %v85, %v94
    %v98 = vlaneseq
    %v99 = vshrl.u32 %v98, 7
    %v100 = vsub.s32 0, %v99
    %v101 = vrot.slane %v43, %v100
    %v102 = vlaneseq
    %v103 = vshrl.u32 %v102, 7
    %v104 = vsub.s32 1, %v103
    %v105 = vrot.slane %v43, %v104
    %v108 = vsel %vm95, %v101, 0.0
    %v109 = vsel %vm96, %v105, 0.0
    %v110 = vadd.f32 %v108, 0.0
    %v111 = vadd.f32 %v109, 0.0
    %v112 = vlaneseq
    %v113 = vshrl.u32 %v112, 7
    %v114 = vsub.s32 0, %v113
    %v115 = vrot.slane %v40, %v114
    %v116 = vlaneseq
    %v117 = vshrl.u32 %v116, 7
    %v118 = vsub.s32 1, %v117
    %v119 = vrot.slane %v40, %v118
    %vm120 = vcmp.eq.s32.totalorder %v85, %v115
    %vm121 = vcmp.eq.s32.totalorder %v85, %v119
    %v123 = vlaneseq
    %v124 = vshrl.u32 %v123, 7
    %v125 = vsub.s32 0, %v124
    %v126 = vrot.slane %v46, %v125
    %v127 = vlaneseq
    %v128 = vshrl.u32 %v127, 7
    %v129 = vsub.s32 1, %v128
    %v130 = vrot.slane %v46, %v129
    %v133 = vsel %vm120, %v126, 0.0
    %v134 = vsel %vm121, %v130, 0.0
    %v135 = vadd.f32 %v110, %v133
    %v136 = vadd.f32 %v111, %v134
    %v137 = vadd.s32 %v40, 1
    %v138 = vlaneseq
    %v139 = vshrl.u32 %v138, 7
    %v140 = vsub.s32 0, %v139
    %v141 = vrot.slane %v137, %v140
    %v142 = vlaneseq
    %v143 = vshrl.u32 %v142, 7
    %v144 = vsub.s32 1, %v143
    %v145 = vrot.slane %v137, %v144
    %vm146 = vcmp.eq.s32.totalorder %v85, %v141
    %vm147 = vcmp.eq.s32.totalorder %v85, %v145
    %v149 = vlaneseq
    %v150 = vshrl.u32 %v149, 7
    %v151 = vsub.s32 0, %v150
    %v152 = vrot.slane %v48, %v151
    %v153 = vlaneseq
    %v154 = vshrl.u32 %v153, 7
    %v155 = vsub.s32 1, %v154
    %v156 = vrot.slane %v48, %v155
    %v159 = vsel %vm146, %v152, 0.0
    %v160 = vsel %vm147, %v156, 0.0
    %v161 = vadd.f32 %v135, %v159
    %v162 = vadd.f32 %v136, %v160
    %v163 = vadd.s32 %v56, 4294967295
    %v164 = vlaneseq
    %v165 = vshrl.u32 %v164, 7
    %v166 = vsub.s32 0, %v165
    %v167 = vrot.slane %v163, %v166
    %v168 = vlaneseq
    %v169 = vshrl.u32 %v168, 7
    %v170 = vsub.s32 1, %v169
    %v171 = vrot.slane %v163, %v170
    %vm172 = vcmp.eq.s32.totalorder %v83, %v167
    %vm173 = vcmp.eq.s32.totalorder %v83, %v171
    %v175 = vlaneseq
    %v176 = vshrl.u32 %v175, 7
    %v177 = vsub.s32 0, %v176
    %v178 = vrot.slane %v59, %v177
    %v179 = vlaneseq
    %v180 = vshrl.u32 %v179, 7
    %v181 = vsub.s32 1, %v180
    %v182 = vrot.slane %v59, %v181
    %v185 = vsel %vm172, %v178, 0.0
    %v186 = vsel %vm173, %v182, 0.0
    %v187 = vadd.f32 %v185, 0.0
    %v188 = vadd.f32 %v186, 0.0
    %v189 = vlaneseq
    %v190 = vshrl.u32 %v189, 7
    %v191 = vsub.s32 0, %v190
    %v192 = vrot.slane %v56, %v191
    %v193 = vlaneseq
    %v194 = vshrl.u32 %v193, 7
    %v195 = vsub.s32 1, %v194
    %v196 = vrot.slane %v56, %v195
    %vm197 = vcmp.eq.s32.totalorder %v83, %v192
    %vm198 = vcmp.eq.s32.totalorder %v83, %v196
    %v200 = vlaneseq
    %v201 = vshrl.u32 %v200, 7
    %v202 = vsub.s32 0, %v201
    %v203 = vrot.slane %v62, %v202
    %v204 = vlaneseq
    %v205 = vshrl.u32 %v204, 7
    %v206 = vsub.s32 1, %v205
    %v207 = vrot.slane %v62, %v206
    %v210 = vsel %vm197, %v203, 0.0
    %v211 = vsel %vm198, %v207, 0.0
    %v212 = vadd.f32 %v187, %v210
    %v213 = vadd.f32 %v188, %v211
    %v214 = vadd.s32 %v56, 1
    %v215 = vlaneseq
    %v216 = vshrl.u32 %v215, 7
    %v217 = vsub.s32 0, %v216
    %v218 = vrot.slane %v214, %v217
    %v219 = vlaneseq
    %v220 = vshrl.u32 %v219, 7
    %v221 = vsub.s32 1, %v220
    %v222 = vrot.slane %v214, %v221
    %vm223 = vcmp.eq.s32.totalorder %v83, %v218
    %vm224 = vcmp.eq.s32.totalorder %v83, %v222
    %v226 = vlaneseq
    %v227 = vshrl.u32 %v226, 7
    %v228 = vsub.s32 0, %v227
    %v229 = vrot.slane %v64, %v228
    %v230 = vlaneseq
    %v231 = vshrl.u32 %v230, 7
    %v232 = vsub.s32 1, %v231
    %v233 = vrot.slane %v64, %v232
    %v236 = vsel %vm223, %v229, 0.0
    %v237 = vsel %vm224, %v233, 0.0
    %v238 = vadd.f32 %v212, %v236
    %v239 = vadd.f32 %v213, %v237
    %v240 = vadd.s32 %v72, 4294967295
    %v241 = vlaneseq
    %v242 = vshrl.u32 %v241, 7
    %v243 = vsub.s32 0, %v242
    %v244 = vrot.slane %v240, %v243
    %v245 = vlaneseq
    %v246 = vshrl.u32 %v245, 7
    %v247 = vsub.s32 1, %v246
    %v248 = vrot.slane %v240, %v247
    %vm249 = vcmp.eq.s32.totalorder %v83, %v244
    %vm250 = vcmp.eq.s32.totalorder %v83, %v248
    %v252 = vlaneseq
    %v253 = vshrl.u32 %v252, 7
    %v254 = vsub.s32 0, %v253
    %v255 = vrot.slane %v75, %v254
    %v256 = vlaneseq
    %v257 = vshrl.u32 %v256, 7
    %v258 = vsub.s32 1, %v257
    %v259 = vrot.slane %v75, %v258
    %v262 = vsel %vm249, %v255, 0.0
    %v263 = vsel %vm250, %v259, 0.0
    %v264 = vadd.f32 %v262, 0.0
    %v265 = vadd.f32 %v263, 0.0
    %v266 = vlaneseq
    %v267 = vshrl.u32 %v266, 7
    %v268 = vsub.s32 0, %v267
    %v269 = vrot.slane %v72, %v268
    %v270 = vlaneseq
    %v271 = vshrl.u32 %v270, 7
    %v272 = vsub.s32 1, %v271
    %v273 = vrot.slane %v72, %v272
    %vm274 = vcmp.eq.s32.totalorder %v83, %v269
    %vm275 = vcmp.eq.s32.totalorder %v83, %v273
    %v277 = vlaneseq
    %v278 = vshrl.u32 %v277, 7
    %v279 = vsub.s32 0, %v278
    %v280 = vrot.slane %v78, %v279
    %v281 = vlaneseq
    %v282 = vshrl.u32 %v281, 7
    %v283 = vsub.s32 1, %v282
    %v284 = vrot.slane %v78, %v283
    %v287 = vsel %vm274, %v280, 0.0
    %v288 = vsel %vm275, %v284, 0.0
    %v289 = vadd.f32 %v264, %v287
    %v290 = vadd.f32 %v265, %v288
    %v291 = vadd.s32 %v72, 1
    %v292 = vlaneseq
    %v293 = vshrl.u32 %v292, 7
    %v294 = vsub.s32 0, %v293
    %v295 = vrot.slane %v291, %v294
    %v296 = vlaneseq
    %v297 = vshrl.u32 %v296, 7
    %v298 = vsub.s32 1, %v297
    %v299 = vrot.slane %v291, %v298
    %vm300 = vcmp.eq.s32.totalorder %v83, %v295
    %vm301 = vcmp.eq.s32.totalorder %v83, %v299
    %v303 = vlaneseq
    %v304 = vshrl.u32 %v303, 7
    %v305 = vsub.s32 0, %v304
    %v306 = vrot.slane %v80, %v305
    %v307 = vlaneseq
    %v308 = vshrl.u32 %v307, 7
    %v309 = vsub.s32 1, %v308
    %v310 = vrot.slane %v80, %v309
    %v313 = vsel %vm300, %v306, 0.0
    %v314 = vsel %vm301, %v310, 0.0
    %v315 = vadd.f32 %v289, %v313
    %v316 = vadd.f32 %v290, %v314
    %v319 = vcombine.low %v161, %v162
    %v320 = vcombine.high %v161, %v162
    %v322 = vunpack.c.l.s4 1966171168
    %v323 = vunpack.c.0.s8 %v322
    %v324 = vlaneseq
    %v325 = vshrl.u32 %v324, 7
    %v326 = vsub.s32 %v323, %v325
    %v327 = vrot.slane %v319, %v326
    %v329 = vunpack.c.l.s4 1966171168
    %v330 = vunpack.c.0.s8 %v329
    %v331 = vlaneseq
    %v332 = vshrl.u32 %v331, 7
    %v333 = vsub.s32 %v330, %v332
    %v334 = vrot.slane %v320, %v333
    %v335 = vcombine.high %v327, %v327
    %v336 = vcombine.high %v334, %v334
    %v338 = vunpack.c.l.s4 1966171168
    %v339 = vunpack.c.0.s8 %v338
    %v340 = vlaneseq
    %v341 = vshrl.u32 %v340, 7
    %v342 = vsub.s32 %v339, %v341
    %v343 = vrot.slane %v327, %v342
    %v345 = vunpack.c.l.s4 1966171168
    %v346 = vunpack.c.0.s8 %v345
    %v347 = vlaneseq
    %v348 = vshrl.u32 %v347, 7
    %v349 = vsub.s32 %v346, %v348
    %v350 = vrot.slane %v334, %v349
    %v352 = vunpack.c.l.s4 1966171168
    %v353 = vunpack.c.0.s8 %v352
    %v354 = vlaneseq
    %v355 = vshrl.u32 %v354, 7
    %v356 = vsub.s32 %v353, %v355
    %v357 = vrot.slane %v335, %v356
    %v359 = vunpack.c.l.s4 1966171168
    %v360 = vunpack.c.0.s8 %v359
    %v361 = vlaneseq
    %v362 = vshrl.u32 %v361, 7
    %v363 = vsub.s32 %v360, %v362
    %v364 = vrot.slane %v336, %v363
    %v365 = vcombine.high %v343, %v343
    %v366 = vcombine.high %v350, %v350
    %v367 = vcombine.high %v357, %v357
    %v368 = vcombine.high %v364, %v364
    %v369 = vlaneseq
    %v370 = vshrl.u32 %v369, 7
    %v371 = vsub.s32 0, %v370
    %v372 = vrot.slane %v343, %v371
    %v373 = vlaneseq
    %v374 = vshrl.u32 %v373, 7
    %v375 = vsub.s32 1, %v374
    %v376 = vrot.slane %v343, %v375
    %v377 = vlaneseq
    %v378 = vshrl.u32 %v377, 7
    %v379 = vsub.s32 0, %v378
    %v380 = vrot.slane %v357, %v379
    %v381 = vlaneseq
    %v382 = vshrl.u32 %v381, 7
    %v383 = vsub.s32 1, %v382
    %v384 = vrot.slane %v357, %v383
    %v385 = vlaneseq
    %v386 = vshrl.u32 %v385, 7
    %v387 = vsub.s32 0, %v386
    %v388 = vrot.slane %v365, %v387
    %v389 = vlaneseq
    %v390 = vshrl.u32 %v389, 7
    %v391 = vsub.s32 1, %v390
    %v392 = vrot.slane %v365, %v391
    %v393 = vlaneseq
    %v394 = vshrl.u32 %v393, 7
    %v395 = vsub.s32 0, %v394
    %v396 = vrot.slane %v367, %v395
    %v397 = vlaneseq
    %v398 = vshrl.u32 %v397, 7
    %v399 = vsub.s32 1, %v398
    %v400 = vrot.slane %v367, %v399
    %v401 = vlaneseq
    %v402 = vshrl.u32 %v401, 7
    %v403 = vsub.s32 0, %v402
    %v404 = vrot.slane %v350, %v403
    %v405 = vlaneseq
    %v406 = vshrl.u32 %v405, 7
    %v407 = vsub.s32 1, %v406
    %v408 = vrot.slane %v350, %v407
    %v409 = vlaneseq
    %v410 = vshrl.u32 %v409, 7
    %v411 = vsub.s32 0, %v410
    %v412 = vrot.slane %v364, %v411
    %v413 = vlaneseq
    %v414 = vshrl.u32 %v413, 7
    %v415 = vsub.s32 1, %v414
    %v416 = vrot.slane %v364, %v415
    %v417 = vlaneseq
    %v418 = vshrl.u32 %v417, 7
    %v419 = vsub.s32 0, %v418
    %v420 = vrot.slane %v366, %v419
    %v421 = vlaneseq
    %v422 = vshrl.u32 %v421, 7
    %v423 = vsub.s32 1, %v422
    %v424 = vrot.slane %v366, %v423
    %v425 = vlaneseq
    %v426 = vshrl.u32 %v425, 7
    %v427 = vsub.s32 0, %v426
    %v428 = vrot.slane %v368, %v427
    %v429 = vlaneseq
    %v430 = vshrl.u32 %v429, 7
    %v431 = vsub.s32 1, %v430
    %v432 = vrot.slane %v368, %v431
    %v449 = vmul.f32 %v372, %v238
    %v450 = vmul.f32 %v376, %v239
    %v451 = vmul.f32 %v380, %v238
    %v452 = vmul.f32 %v384, %v239
    %v453 = vmul.f32 %v388, %v238
    %v454 = vmul.f32 %v392, %v239
    %v455 = vmul.f32 %v396, %v238
    %v456 = vmul.f32 %v400, %v239
    %v457 = vmul.f32 %v404, %v238
    %v458 = vmul.f32 %v408, %v239
    %v459 = vmul.f32 %v412, %v238
    %v460 = vmul.f32 %v416, %v239
    %v461 = vmul.f32 %v420, %v238
    %v462 = vmul.f32 %v424, %v239
    %v463 = vmul.f32 %v428, %v238
    %v464 = vmul.f32 %v432, %v239
    %v465 = vld [vmem:[#allocation2] sm:$0xf]
    %v466 = vld [vmem:[#allocation2 + $0x8] sm:$0xf]
    %v467 = vlaneseq
    %v468 = vshrl.u32 %v467, 7
    %v469 = vsub.s32 0, %v468
    %v470 = vrot.slane %v465, %v469
    %v471 = vlaneseq
    %v472 = vshrl.u32 %v471, 7
    %v473 = vsub.s32 0, %v472
    %v474 = vrot.slane %v466, %v473
    %v475 = vmul.f32 %v470, %v315
    %v476 = vmul.f32 %v474, %v316
    %v477 = vlaneseq
    %v478 = vshrl.u32 %v477, 7
    %v479 = vsub.s32 1, %v478
    %v480 = vrot.slane %v465, %v479
    %v481 = vlaneseq
    %v482 = vshrl.u32 %v481, 7
    %v483 = vsub.s32 1, %v482
    %v484 = vrot.slane %v466, %v483
    %v485 = vmul.f32 %v480, %v315
    %v486 = vmul.f32 %v484, %v316
    %v487 = vlaneseq
    %v488 = vshrl.u32 %v487, 7
    %v489 = vsub.s32 2, %v488
    %v490 = vrot.slane %v465, %v489
    %v491 = vlaneseq
    %v492 = vshrl.u32 %v491, 7
    %v493 = vsub.s32 2, %v492
    %v494 = vrot.slane %v466, %v493
    %v495 = vmul.f32 %v490, %v315
    %v496 = vmul.f32 %v494, %v316
    %v497 = vlaneseq
    %v498 = vshrl.u32 %v497, 7
    %v499 = vsub.s32 3, %v498
    %v500 = vrot.slane %v465, %v499
    %v501 = vlaneseq
    %v502 = vshrl.u32 %v501, 7
    %v503 = vsub.s32 3, %v502
    %v504 = vrot.slane %v466, %v503
    %v505 = vmul.f32 %v500, %v315
    %v506 = vmul.f32 %v504, %v316
    %507 = vmatprep.subr.mxu0 %v476
    %508 = vmatpush1.xpose.msra.mxu0 %v475
    %509 = vmatprep.subr.mxu0 %v486
    %510 = vmatpush1.xpose.msra.mxu0 %v485
    %511 = vmatprep.subr.mxu0 %v496
    %512 = vmatpush1.xpose.msra.mxu0 %v495
    %513 = vmatprep.subr.mxu0 %v506
    %514 = vmatpush1.xpose.msra.mxu0 %v505
    %515 = vmatprep.subr.mxu0 0.0
    %516 = vmatpush1.xpose.msra.mxu0 0.0
    %517 = vmatprep.subr.mxu0 0.0
    %518 = vmatpush1.xpose.msra.mxu0 0.0
    %519 = vmatprep.subr.mxu0 0.0
    %520 = vmatpush1.xpose.msra.mxu0 0.0
    %521 = vmatprep.subr.mxu0 0.0
    %522 = vmatpush1.xpose.msra.mxu0 0.0
    %523 = vmatprep.subr.mxu0 0.0
    %524 = vmatpush1.xpose.msra.mxu0 0.0
    %525 = vmatprep.subr.mxu0 0.0
    %526 = vmatpush1.xpose.msra.mxu0 0.0
    %527 = vmatprep.subr.mxu0 0.0
    %528 = vmatpush1.xpose.msra.mxu0 0.0
    %529 = vmatprep.subr.mxu0 0.0
    %530 = vmatpush1.xpose.msra.mxu0 0.0
    %531 = vmatprep.subr.mxu0 0.0
    %532 = vmatpush1.xpose.msra.mxu0 0.0
    %533 = vmatprep.subr.mxu0 0.0
    %534 = vmatpush1.xpose.msra.mxu0 0.0
    %535 = vmatprep.subr.mxu0 0.0
    %536 = vmatpush1.xpose.msra.mxu0 0.0
    %537 = vmatprep.subr.mxu0 0.0
    %538 = vmatpush1.xpose.msra.mxu0 0.0
    %539 = vmatprep.subr.mxu0 0.0
    %540 = vmatpush1.xpose.msra.mxu0 0.0
    %541 = vmatprep.subr.mxu0 0.0
    %542 = vmatpush1.xpose.msra.mxu0 0.0
    %543 = vmatprep.subr.mxu0 0.0
    %544 = vmatpush1.xpose.msra.mxu0 0.0
    %545 = vmatprep.subr.mxu0 0.0
    %546 = vmatpush1.xpose.msra.mxu0 0.0
    %547 = vmatprep.subr.mxu0 0.0
    %548 = vmatpush1.xpose.msra.mxu0 0.0
    %549 = vmatprep.subr.mxu0 0.0
    %550 = vmatpush1.xpose.msra.mxu0 0.0
    %551 = vmatprep.subr.mxu0 0.0
    %552 = vmatpush1.xpose.msra.mxu0 0.0
    %553 = vmatprep.subr.mxu0 0.0
    %554 = vmatpush1.xpose.msra.mxu0 0.0
    %555 = vmatprep.subr.mxu0 0.0
    %556 = vmatpush1.xpose.msra.mxu0 0.0
    %557 = vmatprep.subr.mxu0 0.0
    %558 = vmatpush1.xpose.msra.mxu0 0.0
    %559 = vmatprep.subr.mxu0 0.0
    %560 = vmatpush1.xpose.msra.mxu0 0.0
    %561 = vmatprep.subr.mxu0 0.0
    %562 = vmatpush1.xpose.msra.mxu0 0.0
    %563 = vmatprep.subr.mxu0 0.0
    %564 = vmatpush1.xpose.msra.mxu0 0.0
    %565 = vmatprep.subr.mxu0 0.0
    %566 = vmatpush1.xpose.msra.mxu0 0.0
    %567 = vmatprep.subr.mxu0 0.0
    %568 = vmatpush1.xpose.msra.mxu0 0.0
    %569 = vmatprep.subr.mxu0 0.0
    %570 = vmatpush1.xpose.msra.mxu0 0.0
    %571 = vmatprep.mubr.f32.mxu0 %v450
    %572 = vmatmul.mubr.f32.gmra.mrb[0].mxu0 %v449
    %v573 = vpop.f32.mrb[0].mxu0
    %v574 = vadd.f32 0.0, %v573
    %v575 = vpop.f32.mrb[0].mxu0
    %576 = vmatprep.mubr.f32.mxu0 %v452
    %577 = vmatmul.mubr.f32.gmra.mrb[0].mxu0 %v451
    %v578 = vpop.f32.mrb[0].mxu0
    %v579 = vadd.f32 0.0, %v578
    %v580 = vpop.f32.mrb[0].mxu0
    %581 = vmatprep.mubr.f32.mxu0 %v454
    %582 = vmatmul.mubr.f32.gmra.mrb[0].mxu0 %v453
    %v583 = vpop.f32.mrb[0].mxu0
    %v584 = vadd.f32 0.0, %v583
    %v585 = vpop.f32.mrb[0].mxu0
    %586 = vmatprep.mubr.f32.mxu0 %v456
    %587 = vmatmul.mubr.f32.gmra.mrb[0].mxu0 %v455
    %v588 = vpop.f32.mrb[0].mxu0
    %v589 = vadd.f32 0.0, %v588
    %v590 = vpop.f32.mrb[0].mxu0
    %591 = vmatprep.mubr.f32.mxu0 %v458
    %592 = vmatmul.mubr.f32.gmra.mrb[0].mxu0 %v457
    %v593 = vpop.f32.mrb[0].mxu0
    %v594 = vadd.f32 0.0, %v593
    %v595 = vpop.f32.mrb[0].mxu0
    %596 = vmatprep.mubr.f32.mxu0 %v460
    %597 = vmatmul.mubr.f32.gmra.mrb[0].mxu0 %v459
    %v598 = vpop.f32.mrb[0].mxu0
    %v599 = vadd.f32 0.0, %v598
    %v600 = vpop.f32.mrb[0].mxu0
    %601 = vmatprep.mubr.f32.mxu0 %v462
    %602 = vmatmul.mubr.f32.gmra.mrb[0].mxu0 %v461
    %v603 = vpop.f32.mrb[0].mxu0
    %v604 = vadd.f32 0.0, %v603
    %v605 = vpop.f32.mrb[0].mxu0
    %606 = vmatprep.mubr.f32.mxu0 %v464
    %607 = vmatmul.mubr.f32.gmra.mrb[0].mxu0 %v463
    %v608 = vpop.f32.mrb[0].mxu0
    %v609 = vadd.f32 0.0, %v608
    %v610 = vpop.f32.mrb[0].mxu0
    %611 = vdwg.mxu0
    %v612 = vld [vmem:[%s1] sm:$0xff]
    %v613 = vld [vmem:[%s1 + $0x8] sm:$0xff]
    %v614 = vld [vmem:[%s1 + $0x10] sm:$0xff]
    %v615 = vld [vmem:[%s1 + $0x18] sm:$0xff]
    %v616 = vld [vmem:[%s1 + $0x20] sm:$0xff]
    %v617 = vld [vmem:[%s1 + $0x28] sm:$0xff]
    %v618 = vld [vmem:[%s1 + $0x30] sm:$0xff]
    %v619 = vld [vmem:[%s1 + $0x38] sm:$0xff]
    %v620 = vadd.f32 %v612, %v574
    %v621 = vadd.f32 %v613, %v579
    %v622 = vadd.f32 %v614, %v584
    %v623 = vadd.f32 %v615, %v589
    %v624 = vadd.f32 %v616, %v594
    %v625 = vadd.f32 %v617, %v599
    %v626 = vadd.f32 %v618, %v604
    %v627 = vadd.f32 %v619, %v609
    %vm628 = vcmask 261120
    %629 = vst.msk [vmem:[%s1] sm:$0xff] %vm628, %v620
    %630 = vst.msk [vmem:[%s1 + $0x8] sm:$0xff] %vm628, %v621
    %631 = vst.msk [vmem:[%s1 + $0x10] sm:$0xff] %vm628, %v622
    %632 = vst.msk [vmem:[%s1 + $0x18] sm:$0xff] %vm628, %v623
    %633 = vst.msk [vmem:[%s1 + $0x20] sm:$0xff] %vm628, %v624
    %634 = vst.msk [vmem:[%s1 + $0x28] sm:$0xff] %vm628, %v625
    %635 = vst.msk [vmem:[%s1 + $0x30] sm:$0xff] %vm628, %v626
    %636 = vst.msk [vmem:[%s1 + $0x38] sm:$0xff] %vm628, %v627
    // Predicated region
    $region14: #{tpu_custom_call.1} parent=1 // pred_check
      _
    $region15: #{tpu_custom_call.1} parent=1 // pred_check_branch
      %638 = sbr.rel (0) target = $region17
    $region16: #{tpu_custom_call.1} parent=1 // pred_region
      _
    $region17: #{tpu_custom_call.1} parent=1 // pred_fallthru
      _
    // Predicated region
    $region18: #{tpu_custom_call.1} parent=1 // pred_check
      _
    $region19: #{tpu_custom_call.1} parent=1 // pred_check_branch
      %640 = sbr.rel (0) target = $region21
    $region20: #{tpu_custom_call.1} parent=1 // pred_region
      _
    $region21: #{tpu_custom_call.1} parent=1 // pred_fallthru
      _
    %641 = vsyncpa [#allocation3], 1

</llo_original>
